<compile_context>
chip_gen: v5e
topology: v5e:2x2
jax: 0.10.0
libtpu: 0.0.40
codegen_flags: <defaults>
</compile_context>

<pallas_src>
import jax
import jax.numpy as jnp
from jax.experimental import pallas as pl
from jax.experimental.pallas import tpu as pltpu


def _round_up(n, m):
    return ((n + m - 1) // m) * m


def mouse_net_kernel(x_ref, w1_ref, b1_ref, w2_ref, b2_ref,
                     w3_ref, b3_ref, w4_ref, b4_ref, o_ref):
    # x_ref: (TB, 10) f32 batch tile. w1/biases f32, w2..w4 bf16.  MXU matmuls
    # accumulate in f32; bias + ReLU run on the VPU in f32; activations are cast to
    # bf16 only immediately before the next matmul.
    x = x_ref[...]
    h = jnp.dot(x, w1_ref[...], preferred_element_type=jnp.float32) + b1_ref[...]
    h = jnp.maximum(h, 0.0)
    h = jnp.dot(h.astype(jnp.bfloat16), w2_ref[...],
                preferred_element_type=jnp.float32) + b2_ref[...]
    h = jnp.maximum(h, 0.0)
    h = jnp.dot(h.astype(jnp.bfloat16), w3_ref[...],
                preferred_element_type=jnp.float32) + b3_ref[...]
    h = jnp.maximum(h, 0.0)
    out = jnp.dot(h.astype(jnp.bfloat16), w4_ref[...],
                  preferred_element_type=jnp.float32) + b4_ref[...]
    o_ref[...] = out.astype(o_ref.dtype)


def _pack_params(params):
    """Cast matmul operands: layer-1 weight stays f32 (K=10, better parity), the rest bf16."""
    bf, f = jnp.bfloat16, jnp.float32
    return (
        params["w1"].astype(f),   # (10, 128)
        params["b1"].astype(f),   # (1, 128)
        params["w2"].astype(bf),  # (128, 128)
        params["b2"].astype(f),   # (1, 128)
        params["w3"].astype(bf),  # (128, 64)
        params["b3"].astype(f),   # (1, 64)
        params["w4"].astype(bf),  # (64, 2)
        params["b4"].astype(f),   # (1, 2)
    )


def _choose_tb(B, tb):
    """Sublane-aligned batch tile; prefer >= 2 grid steps (v7x megacore sharding)."""
    tb = max(16, _round_up(int(tb), 16))      # validate / align the user-supplied tile
    if B <= 16:
        return _round_up(max(B, 8), 8)        # tiny batch: one small block
    # Largest tile <= tb that still yields at least two grid steps.
    half = _round_up(pl.cdiv(B, 2), 16)
    return min(tb, half)


def mouse_net_forward(x, params, *, tb=2048):
    """x: (B, 10) float32. Returns (B, 2) float32."""
    B, F = x.shape
    assert F == 10, f"expected 10 input features, got {F}"
    TB = _choose_tb(B, tb)
    grid = (pl.cdiv(B, TB),)                  # partial last block handled (masked) by Pallas
    packed = _pack_params(params)

    in_specs = [pl.BlockSpec((TB, F), lambda i: (i, 0))]                   # batch-tiled x
    in_specs += [pl.BlockSpec(p.shape, lambda i: (0, 0)) for p in packed]  # VMEM-resident

    return pl.pallas_call(
        mouse_net_kernel,
        out_shape=jax.ShapeDtypeStruct((B, 2), jnp.float32),
        grid=grid,
        in_specs=in_specs,
        out_specs=pl.BlockSpec((TB, 2), lambda i: (i, 0)),
        compiler_params=pltpu.CompilerParams(
            dimension_semantics=("parallel",),   # shard batch tiles across TCs (v7x)
            vmem_limit_bytes=32 * 1024 * 1024,   # ~8 MiB used at TB=2048; safe on all gens
        ),
    )(x.astype(jnp.float32), *packed)


def init_params(key):
    """Deterministic init mirroring nn.Linear shapes (stored transposed for x @ W)."""
    sizes = [(10, 128), (128, 128), (128, 64), (64, 2)]
    params = {}
    keys = jax.random.split(key, 2 * len(sizes))
    for i, (fan_in, fan_out) in enumerate(sizes):
        bound = 1.0 / jnp.sqrt(fan_in)
        w = jax.random.uniform(keys[2 * i], (fan_in, fan_out),
                               minval=-bound, maxval=bound, dtype=jnp.float32)
        b = jax.random.uniform(keys[2 * i + 1], (1, fan_out),
                               minval=-bound, maxval=bound, dtype=jnp.float32)
        params[f"w{i + 1}"] = w
        params[f"b{i + 1}"] = b
    return params


def reference_forward(x, params, *, mixed=False):
    """Pure-JAX reference. mixed=True mirrors the kernel's dtype path (f32 layer 1,
    bf16 matmul inputs for layers 2-4, f32 accumulation); mixed=False is strict f32."""
    def dense(h, w, b, lo_prec):
        if lo_prec and mixed:
            h, w = h.astype(jnp.bfloat16), w.astype(jnp.bfloat16)
        return jnp.dot(h, w, preferred_element_type=jnp.float32) + b

    h = jnp.maximum(dense(x, params["w1"], params["b1"], False), 0.0)
    h = jnp.maximum(dense(h, params["w2"], params["b2"], True), 0.0)
    h = jnp.maximum(dense(h, params["w3"], params["b3"], True), 0.0)
    return dense(h, params["w4"], params["b4"], True)


if __name__ == "__main__":
    key = jax.random.PRNGKey(0)
    pkey, xkey1, xkey2 = jax.random.split(key, 3)
    params = init_params(pkey)

    # Small batch: single grid step, block equals the (tiny) batch.
    x_small = jax.random.normal(xkey1, (8, 10), dtype=jnp.float32)
    out_small = jax.block_until_ready(mouse_net_forward(x_small, params))
    assert out_small.shape == (8, 2), out_small.shape

    # Batch not a multiple of the tile: multi-step grid + masked partial last block
    # (no batch padding or output slicing anymore).
    x_big = jax.random.normal(xkey2, (200, 10), dtype=jnp.float32)
    out_big = jax.block_until_ready(mouse_net_forward(x_big, params, tb=64))    # TB=64, grid=4
    assert out_big.shape == (200, 2), out_big.shape
    out_big_auto = jax.block_until_ready(mouse_net_forward(x_big, params))      # TB=112, grid=2
    assert out_big_auto.shape == (200, 2), out_big_auto.shape

    for x, out in ((x_small, out_small), (x_big, out_big), (x_big, out_big_auto)):
        ref_mixed = reference_forward(x, params, mixed=True)    # mirrors kernel dtype path
        assert jnp.allclose(out, ref_mixed, atol=5e-3, rtol=5e-3), "mismatch vs mixed reference"
        ref_f32 = reference_forward(x, params, mixed=False)     # strict f32 / PyTorch semantics
        assert jnp.allclose(out, ref_f32, atol=5e-2, rtol=5e-2), "mismatch vs f32 reference"

    print("KERNEL_OK")
</pallas_src>

<mosaic_0001>
module attributes {stable_mosaic.version = 11 : i64} {
  func.func @mouse_net_kernel(%arg0: i32, %arg1: memref<8x10xf32, #tpu.memory_space<vmem>>, %arg2: memref<10x128xf32, #tpu.memory_space<vmem>>, %arg3: memref<1x128xf32, #tpu.memory_space<vmem>>, %arg4: memref<128x128xbf16, #tpu.memory_space<vmem>>, %arg5: memref<1x128xf32, #tpu.memory_space<vmem>>, %arg6: memref<128x64xbf16, #tpu.memory_space<vmem>>, %arg7: memref<1x64xf32, #tpu.memory_space<vmem>>, %arg8: memref<64x2xbf16, #tpu.memory_space<vmem>>, %arg9: memref<1x2xf32, #tpu.memory_space<vmem>>, %arg10: memref<8x2xf32, #tpu.memory_space<vmem>>) attributes {dimension_semantics = [#tpu.dimension_semantics<parallel>], iteration_bounds = array<i64: 1>, scalar_prefetch = 0 : i64, scratch_operands = 0 : i64, tpu.core_type = #tpu.core_type<tc>, window_params = [{transform_indices = @transform_0, window_bounds = array<i64: 8, 10>}, {pipeline_mode = #tpu.pipeline_mode<synchronous>, transform_indices = @transform_1, window_bounds = array<i64: 10, 128>}, {pipeline_mode = #tpu.pipeline_mode<synchronous>, transform_indices = @transform_2, window_bounds = array<i64: 1, 128>}, {pipeline_mode = #tpu.pipeline_mode<synchronous>, transform_indices = @transform_3, window_bounds = array<i64: 128, 128>}, {pipeline_mode = #tpu.pipeline_mode<synchronous>, transform_indices = @transform_4, window_bounds = array<i64: 1, 128>}, {pipeline_mode = #tpu.pipeline_mode<synchronous>, transform_indices = @transform_5, window_bounds = array<i64: 128, 64>}, {pipeline_mode = #tpu.pipeline_mode<synchronous>, transform_indices = @transform_6, window_bounds = array<i64: 1, 64>}, {pipeline_mode = #tpu.pipeline_mode<synchronous>, transform_indices = @transform_7, window_bounds = array<i64: 64, 2>}, {pipeline_mode = #tpu.pipeline_mode<synchronous>, transform_indices = @transform_8, window_bounds = array<i64: 1, 2>}, {transform_indices = @transform_9, window_bounds = array<i64: 8, 2>}]} {
    %c0 = arith.constant 0 : index
    %c0_0 = arith.constant 0 : index
    %0 = vector.load %arg1[%c0, %c0_0] : memref<8x10xf32, #tpu.memory_space<vmem>>, vector<8x10xf32>
    %c0_1 = arith.constant 0 : index
    %c0_2 = arith.constant 0 : index
    %1 = vector.load %arg2[%c0_1, %c0_2] : memref<10x128xf32, #tpu.memory_space<vmem>>, vector<10x128xf32>
    %cst = arith.constant dense<0.000000e+00> : vector<8x128xf32>
    %2 = tpu.matmul %0, %1, %cst {dimension_numbers = #tpu.dot_dimension_numbers<[1], [0], [0], [1], [0, 0, 1, 1], [], []>} : vector<8x10xf32>, vector<10x128xf32>, vector<8x128xf32> -> vector<8x128xf32>
    %c0_3 = arith.constant 0 : index
    %c0_4 = arith.constant 0 : index
    %3 = vector.load %arg3[%c0_3, %c0_4] : memref<1x128xf32, #tpu.memory_space<vmem>>, vector<1x128xf32>
    %4 = vector.broadcast %3 : vector<1x128xf32> to vector<8x128xf32>
    %5 = arith.addf %2, %4 : vector<8x128xf32>
    %cst_5 = arith.constant 0.000000e+00 : f32
    %6 = vector.broadcast %cst_5 : f32 to vector<8x128xf32>
    %7 = arith.maximumf %5, %6 : vector<8x128xf32>
    %8 = arith.truncf %7 : vector<8x128xf32> to vector<8x128xbf16>
    %c0_6 = arith.constant 0 : index
    %c0_7 = arith.constant 0 : index
    %9 = vector.load %arg4[%c0_6, %c0_7] : memref<128x128xbf16, #tpu.memory_space<vmem>>, vector<128x128xbf16>
    %cst_8 = arith.constant dense<0.000000e+00> : vector<8x128xf32>
    %10 = tpu.matmul %8, %9, %cst_8 {dimension_numbers = #tpu.dot_dimension_numbers<[1], [0], [0], [1], [0, 0, 1, 1], [], []>} : vector<8x128xbf16>, vector<128x128xbf16>, vector<8x128xf32> -> vector<8x128xf32>
    %c0_9 = arith.constant 0 : index
    %c0_10 = arith.constant 0 : index
    %11 = vector.load %arg5[%c0_9, %c0_10] : memref<1x128xf32, #tpu.memory_space<vmem>>, vector<1x128xf32>
    %12 = vector.broadcast %11 : vector<1x128xf32> to vector<8x128xf32>
    %13 = arith.addf %10, %12 : vector<8x128xf32>
    %cst_11 = arith.constant 0.000000e+00 : f32
    %14 = vector.broadcast %cst_11 : f32 to vector<8x128xf32>
    %15 = arith.maximumf %13, %14 : vector<8x128xf32>
    %16 = arith.truncf %15 : vector<8x128xf32> to vector<8x128xbf16>
    %c0_12 = arith.constant 0 : index
    %c0_13 = arith.constant 0 : index
    %17 = vector.load %arg6[%c0_12, %c0_13] : memref<128x64xbf16, #tpu.memory_space<vmem>>, vector<128x64xbf16>
    %cst_14 = arith.constant dense<0.000000e+00> : vector<8x64xf32>
    %18 = tpu.matmul %16, %17, %cst_14 {dimension_numbers = #tpu.dot_dimension_numbers<[1], [0], [0], [1], [0, 0, 1, 1], [], []>} : vector<8x128xbf16>, vector<128x64xbf16>, vector<8x64xf32> -> vector<8x64xf32>
    %c0_15 = arith.constant 0 : index
    %c0_16 = arith.constant 0 : index
    %19 = vector.load %arg7[%c0_15, %c0_16] : memref<1x64xf32, #tpu.memory_space<vmem>>, vector<1x64xf32>
    %20 = vector.broadcast %19 : vector<1x64xf32> to vector<8x64xf32>
    %21 = arith.addf %18, %20 : vector<8x64xf32>
    %cst_17 = arith.constant 0.000000e+00 : f32
    %22 = vector.broadcast %cst_17 : f32 to vector<8x64xf32>
    %23 = arith.maximumf %21, %22 : vector<8x64xf32>
    %24 = arith.truncf %23 : vector<8x64xf32> to vector<8x64xbf16>
    %c0_18 = arith.constant 0 : index
    %c0_19 = arith.constant 0 : index
    %25 = vector.load %arg8[%c0_18, %c0_19] : memref<64x2xbf16, #tpu.memory_space<vmem>>, vector<64x2xbf16>
    %cst_20 = arith.constant dense<0.000000e+00> : vector<8x2xf32>
    %26 = tpu.matmul %24, %25, %cst_20 {dimension_numbers = #tpu.dot_dimension_numbers<[1], [0], [0], [1], [0, 0, 1, 1], [], []>} : vector<8x64xbf16>, vector<64x2xbf16>, vector<8x2xf32> -> vector<8x2xf32>
    %c0_21 = arith.constant 0 : index
    %c0_22 = arith.constant 0 : index
    %27 = vector.load %arg9[%c0_21, %c0_22] : memref<1x2xf32, #tpu.memory_space<vmem>>, vector<1x2xf32>
    %28 = vector.broadcast %27 : vector<1x2xf32> to vector<8x2xf32>
    %29 = arith.addf %26, %28 : vector<8x2xf32>
    %c0_23 = arith.constant 0 : index
    %c0_24 = arith.constant 0 : index
    %30 = vector.load %arg10[%c0_23, %c0_24] : memref<8x2xf32, #tpu.memory_space<vmem>>, vector<8x2xf32>
    tpu.vector_store %arg10[%c0_23, %c0_24], %29 {strides = array<i32>} : memref<8x2xf32, #tpu.memory_space<vmem>>, vector<8x2xf32>,
    return
  }
  func.func @transform_0(%arg0: i32) -> (i32, i32) {
    %c0_i32 = arith.constant 0 : i32
    %c0_i32_0 = arith.constant 0 : i32
    return %arg0, %c0_i32 : i32, i32
  }
  func.func @transform_1(%arg0: i32) -> (i32, i32) {
    %c0_i32 = arith.constant 0 : i32
    %c0_i32_0 = arith.constant 0 : i32
    %c0_i32_1 = arith.constant 0 : i32
    return %c0_i32, %c0_i32_0 : i32, i32
  }
  func.func @transform_2(%arg0: i32) -> (i32, i32) {
    %c0_i32 = arith.constant 0 : i32
    %c0_i32_0 = arith.constant 0 : i32
    %c0_i32_1 = arith.constant 0 : i32
    return %c0_i32, %c0_i32_0 : i32, i32
  }
  func.func @transform_3(%arg0: i32) -> (i32, i32) {
    %c0_i32 = arith.constant 0 : i32
    %c0_i32_0 = arith.constant 0 : i32
    %c0_i32_1 = arith.constant 0 : i32
    return %c0_i32, %c0_i32_0 : i32, i32
  }
  func.func @transform_4(%arg0: i32) -> (i32, i32) {
    %c0_i32 = arith.constant 0 : i32
    %c0_i32_0 = arith.constant 0 : i32
    %c0_i32_1 = arith.constant 0 : i32
    return %c0_i32, %c0_i32_0 : i32, i32
  }
  func.func @transform_5(%arg0: i32) -> (i32, i32) {
    %c0_i32 = arith.constant 0 : i32
    %c0_i32_0 = arith.constant 0 : i32
    %c0_i32_1 = arith.constant 0 : i32
    return %c0_i32, %c0_i32_0 : i32, i32
  }
  func.func @transform_6(%arg0: i32) -> (i32, i32) {
    %c0_i32 = arith.constant 0 : i32
    %c0_i32_0 = arith.constant 0 : i32
    %c0_i32_1 = arith.constant 0 : i32
    return %c0_i32, %c0_i32_0 : i32, i32
  }
  func.func @transform_7(%arg0: i32) -> (i32, i32) {
    %c0_i32 = arith.constant 0 : i32
    %c0_i32_0 = arith.constant 0 : i32
    %c0_i32_1 = arith.constant 0 : i32
    return %c0_i32, %c0_i32_0 : i32, i32
  }
  func.func @transform_8(%arg0: i32) -> (i32, i32) {
    %c0_i32 = arith.constant 0 : i32
    %c0_i32_0 = arith.constant 0 : i32
    %c0_i32_1 = arith.constant 0 : i32
    return %c0_i32, %c0_i32_0 : i32, i32
  }
  func.func @transform_9(%arg0: i32) -> (i32, i32) {
    %c0_i32 = arith.constant 0 : i32
    %c0_i32_0 = arith.constant 0 : i32
    return %arg0, %c0_i32 : i32, i32
  }
}

</mosaic_0001>

<llo_original>
// kernel: tpu_custom_call.1
$region0: #{tpu_custom_call.1}
  #allocation0 [shape = 'u32[]', space=smem, size = 0x4, offset = 0x4, fixed_abs, tag = 'smem constant byte address 0x4 - core index']
  #allocation1 [shape = 'u32[72,128]{1,0:T(1,128)}', space=vmem, size = 0x9000, scoped, tag = 'internal scratch']
  %s0 = inlined_call_operand.vmem [shape: f32[8,10], index: 0, kind: input, shape index: {}]
  %s1 = inlined_call_operand.vmem [shape: f32[10,128], index: 1, kind: input, shape index: {}]
  %s2 = inlined_call_operand.vmem [shape: f32[1,128], index: 2, kind: input, shape index: {}]
  %s3 = inlined_call_operand.vmem [shape: bf16[128,128], index: 3, kind: input, shape index: {}]
  %s4 = inlined_call_operand.vmem [shape: f32[1,128], index: 4, kind: input, shape index: {}]
  %s5 = inlined_call_operand.vmem [shape: bf16[128,64], index: 5, kind: input, shape index: {}]
  %s6 = inlined_call_operand.vmem [shape: f32[1,64], index: 6, kind: input, shape index: {}]
  %s7 = inlined_call_operand.vmem [shape: bf16[64,2], index: 7, kind: input, shape index: {}]
  %s8 = inlined_call_operand.vmem [shape: f32[1,2], index: 8, kind: input, shape index: {}]
  %s9 = inlined_call_operand.vmem [shape: f32[8,2], index: 9, kind: output, shape index: {}]
  %s10 = sld [smem:[#allocation0]]
  $region46: #{tpu_custom_call.1} parent=0
    _
  %s12 = ssub.s32 1, %s10
  %s13 = scalar_select 0, %s12, %s10
  // Predicated region
  $region2: #{tpu_custom_call.1} parent=0 // pred_check
    _
  $region3: #{tpu_custom_call.1} parent=0 // pred_check_branch
    %15 = sbr.rel (0) target = $region5
  $region4: #{tpu_custom_call.1} parent=0 // pred_region
    _
  $region5: #{tpu_custom_call.1} parent=0 // pred_fallthru
    _
  // Predicated region
  $region6: #{tpu_custom_call.1} parent=0 // pred_check
    _
  $region7: #{tpu_custom_call.1} parent=0 // pred_check_branch
    %17 = sbr.rel (0) target = $region9
  $region8: #{tpu_custom_call.1} parent=0 // pred_region
    _
  $region9: #{tpu_custom_call.1} parent=0 // pred_fallthru
    _
  // Predicated region
  $region10: #{tpu_custom_call.1} parent=0 // pred_check
    _
  $region11: #{tpu_custom_call.1} parent=0 // pred_check_branch
    %19 = sbr.rel (0) target = $region13
  $region12: #{tpu_custom_call.1} parent=0 // pred_region
    _
  $region13: #{tpu_custom_call.1} parent=0 // pred_fallthru
    _
  // Predicated region
  $region14: #{tpu_custom_call.1} parent=0 // pred_check
    _
  $region15: #{tpu_custom_call.1} parent=0 // pred_check_branch
    %21 = sbr.rel (0) target = $region17
  $region16: #{tpu_custom_call.1} parent=0 // pred_region
    _
  $region17: #{tpu_custom_call.1} parent=0 // pred_fallthru
    _
  // Predicated region
  $region18: #{tpu_custom_call.1} parent=0 // pred_check
    _
  $region19: #{tpu_custom_call.1} parent=0 // pred_check_branch
    %23 = sbr.rel (0) target = $region21
  $region20: #{tpu_custom_call.1} parent=0 // pred_region
    _
  $region21: #{tpu_custom_call.1} parent=0 // pred_fallthru
    _
  // Predicated region
  $region22: #{tpu_custom_call.1} parent=0 // pred_check
    _
  $region23: #{tpu_custom_call.1} parent=0 // pred_check_branch
    %25 = sbr.rel (0) target = $region25
  $region24: #{tpu_custom_call.1} parent=0 // pred_region
    _
  $region25: #{tpu_custom_call.1} parent=0 // pred_fallthru
    _
  // Predicated region
  $region26: #{tpu_custom_call.1} parent=0 // pred_check
    _
  $region27: #{tpu_custom_call.1} parent=0 // pred_check_branch
    %27 = sbr.rel (0) target = $region29
  $region28: #{tpu_custom_call.1} parent=0 // pred_region
    _
  $region29: #{tpu_custom_call.1} parent=0 // pred_fallthru
    _
  // Predicated region
  $region30: #{tpu_custom_call.1} parent=0 // pred_check
    _
  $region31: #{tpu_custom_call.1} parent=0 // pred_check_branch
    %29 = sbr.rel (0) target = $region33
  $region32: #{tpu_custom_call.1} parent=0 // pred_region
    _
  $region33: #{tpu_custom_call.1} parent=0 // pred_fallthru
    _
  // Predicated region
  $region34: #{tpu_custom_call.1} parent=0 // pred_check
    _
  $region35: #{tpu_custom_call.1} parent=0 // pred_check_branch
    %31 = sbr.rel (0) target = $region37
  $region36: #{tpu_custom_call.1} parent=0 // pred_region
    _
  $region37: #{tpu_custom_call.1} parent=0 // pred_fallthru
    _
  %v33 = vld [vmem:[%s0] sm:$0xff]
  %v34 = vld [vmem:[%s1] sm:$0xff]
  %v35 = vld [vmem:[%s1 + $0x8] sm:$0x3]
  %v36 = vld [vmem:[%s2] sm:$0x1]
  %v38 = vperm.slane %v36, 0
  %vm40 = vcmask 80896
  %v42 = vsel %vm40, %v33, 0
  %vm44 = vcmask 1041408
  %v46 = vsel %vm44, %v35, 0
  %48 = vmatpush.msra.mxu0 0.0
  %49 = vmatpush.msra.mxu0 0.0
  %50 = vmatpush.msra.mxu0 0.0
  %51 = vmatpush.msra.mxu0 0.0
  %52 = vmatpush.msra.mxu0 0.0
  %53 = vmatpush.msra.mxu0 0.0
  %54 = vmatpush.msra.mxu0 0.0
  %55 = vmatpush.msra.mxu0 0.0
  %56 = vmatpush.msra.mxu0 0.0
  %57 = vmatpush.msra.mxu0 0.0
  %58 = vmatpush.msra.mxu0 0.0
  %59 = vmatpush.msra.mxu0 0.0
  %60 = vmatpush.msra.mxu0 0.0
  %61 = vmatpush.msra.mxu0 0.0
  %62 = vmatpush.msra.mxu0 %v46
  %63 = vmatpush.msra.mxu0 %v34
  %64 = vmatmul.f32.gmra.mxu0 %v42
  %v65 = vpop.f32.mrf.mxu0
  %v66 = vadd.f32 %v38, %v65
  %67 = vdwg.mxu0
  %v68 = vmax.f32 %v66, 0.0
  %v69 = vpack.c.bf16 %v68, %v68
  %v70 = vld [vmem:[%s3] sm:$0xf]
  %v71 = vld [vmem:[%s3 + $0x4] sm:$0xf]
  %v72 = vld [vmem:[%s3 + $0x8] sm:$0xf]
  %v73 = vld [vmem:[%s3 + $0xc] sm:$0xf]
  %v74 = vld [vmem:[%s3 + $0x10] sm:$0xf]
  %v75 = vld [vmem:[%s3 + $0x14] sm:$0xf]
  %v76 = vld [vmem:[%s3 + $0x18] sm:$0xf]
  %v77 = vld [vmem:[%s3 + $0x1c] sm:$0xf]
  %v78 = vld [vmem:[%s3 + $0x20] sm:$0xf]
  %v79 = vld [vmem:[%s3 + $0x24] sm:$0xf]
  %v80 = vld [vmem:[%s3 + $0x28] sm:$0xf]
  %v81 = vld [vmem:[%s3 + $0x2c] sm:$0xf]
  %v82 = vld [vmem:[%s3 + $0x30] sm:$0xf]
  %v83 = vld [vmem:[%s3 + $0x34] sm:$0xf]
  %v84 = vld [vmem:[%s3 + $0x38] sm:$0xf]
  %v85 = vld [vmem:[%s3 + $0x3c] sm:$0xf]
  %v86 = vld [vmem:[%s4] sm:$0x1]
  %v88 = vperm.slane %v86, 0
  %v106 = vunpack.c.l.b16 %v70
  %v107 = vunpack.c.l.b16 %v71
  %v108 = vunpack.c.l.b16 %v72
  %v109 = vunpack.c.l.b16 %v73
  %v110 = vunpack.c.l.b16 %v74
  %v111 = vunpack.c.l.b16 %v75
  %v112 = vunpack.c.l.b16 %v76
  %v113 = vunpack.c.l.b16 %v77
  %v114 = vunpack.c.l.b16 %v78
  %v115 = vunpack.c.l.b16 %v79
  %v116 = vunpack.c.l.b16 %v80
  %v117 = vunpack.c.l.b16 %v81
  %v118 = vunpack.c.l.b16 %v82
  %v119 = vunpack.c.l.b16 %v83
  %v120 = vunpack.c.l.b16 %v84
  %v121 = vunpack.c.l.b16 %v85
  %v122 = vpack.c.b16 %v107, %v106
  %v123 = vpack.c.b16 %v109, %v108
  %v124 = vpack.c.b16 %v111, %v110
  %v125 = vpack.c.b16 %v113, %v112
  %v126 = vpack.c.b16 %v115, %v114
  %v127 = vpack.c.b16 %v117, %v116
  %v128 = vpack.c.b16 %v119, %v118
  %v129 = vpack.c.b16 %v121, %v120
  %138 = vmatpush.bf16.msra.mxu0 %v129
  %139 = vmatpush.bf16.msra.mxu0 %v128
  %140 = vmatpush.bf16.msra.mxu0 %v127
  %141 = vmatpush.bf16.msra.mxu0 %v126
  %142 = vmatpush.bf16.msra.mxu0 %v125
  %143 = vmatpush.bf16.msra.mxu0 %v124
  %144 = vmatpush.bf16.msra.mxu0 %v123
  %145 = vmatpush.bf16.msra.mxu0 %v122
  %146 = vmatmul.bf16.gmra.mxu0 %v69
  %v147 = vpop.f32.mrf.mxu0
  %v148 = vadd.f32 %v88, %v147
  %v149 = vpop.f32.mrf.mxu0
  %150 = vdwg.mxu0
  %v151 = vmax.f32 %v148, 0.0
  %v152 = vpack.c.bf16 %v151, %v151
  %v153 = vld [vmem:[%s5] sm:$0xf]
  %v154 = vld [vmem:[%s5 + $0x4] sm:$0xf]
  %v155 = vld [vmem:[%s5 + $0x8] sm:$0xf]
  %v156 = vld [vmem:[%s5 + $0xc] sm:$0xf]
  %v157 = vld [vmem:[%s5 + $0x10] sm:$0xf]
  %v158 = vld [vmem:[%s5 + $0x14] sm:$0xf]
  %v159 = vld [vmem:[%s5 + $0x18] sm:$0xf]
  %v160 = vld [vmem:[%s5 + $0x1c] sm:$0xf]
  %v161 = vld [vmem:[%s5 + $0x20] sm:$0xf]
  %v162 = vld [vmem:[%s5 + $0x24] sm:$0xf]
  %v163 = vld [vmem:[%s5 + $0x28] sm:$0xf]
  %v164 = vld [vmem:[%s5 + $0x2c] sm:$0xf]
  %v165 = vld [vmem:[%s5 + $0x30] sm:$0xf]
  %v166 = vld [vmem:[%s5 + $0x34] sm:$0xf]
  %v167 = vld [vmem:[%s5 + $0x38] sm:$0xf]
  %v168 = vld [vmem:[%s5 + $0x3c] sm:$0xf]
  %v169 = vld [vmem:[%s6] sm:$0x1]
  %v171 = vperm.slane %v169, 0
  %v189 = vunpack.c.l.b16 %v153
  %v190 = vunpack.c.l.b16 %v154
  %v191 = vunpack.c.l.b16 %v155
  %v192 = vunpack.c.l.b16 %v156
  %v193 = vunpack.c.l.b16 %v157
  %v194 = vunpack.c.l.b16 %v158
  %v195 = vunpack.c.l.b16 %v159
  %v196 = vunpack.c.l.b16 %v160
  %v197 = vunpack.c.l.b16 %v161
  %v198 = vunpack.c.l.b16 %v162
  %v199 = vunpack.c.l.b16 %v163
  %v200 = vunpack.c.l.b16 %v164
  %v201 = vunpack.c.l.b16 %v165
  %v202 = vunpack.c.l.b16 %v166
  %v203 = vunpack.c.l.b16 %v167
  %v204 = vunpack.c.l.b16 %v168
  %v205 = vpack.c.b16 %v190, %v189
  %v206 = vpack.c.b16 %v192, %v191
  %v207 = vpack.c.b16 %v194, %v193
  %v208 = vpack.c.b16 %v196, %v195
  %v209 = vpack.c.b16 %v198, %v197
  %v210 = vpack.c.b16 %v200, %v199
  %v211 = vpack.c.b16 %v202, %v201
  %v212 = vpack.c.b16 %v204, %v203
  %221 = vmatpush.bf16.msra.mxu0 %v212
  %222 = vmatpush.bf16.msra.mxu0 %v211
  %223 = vmatpush.bf16.msra.mxu0 %v210
  %224 = vmatpush.bf16.msra.mxu0 %v209
  %225 = vmatpush.bf16.msra.mxu0 %v208
  %226 = vmatpush.bf16.msra.mxu0 %v207
  %227 = vmatpush.bf16.msra.mxu0 %v206
  %228 = vmatpush.bf16.msra.mxu0 %v205
  %229 = vmatmul.bf16.gmra.mxu0 %v152
  %v230 = vpop.f32.mrf.mxu0
  %v231 = vadd.f32 %v171, %v230
  %v232 = vpop.f32.mrf.mxu0
  %233 = vdwg.mxu0
  %v234 = vmax.f32 %v231, 0.0
  %v235 = vpack.c.bf16 %v234, %v234
  %v236 = vld [vmem:[%s7] sm:$0xf]
  %v237 = vld [vmem:[%s7 + $0x4] sm:$0xf]
  %v238 = vld [vmem:[%s7 + $0x8] sm:$0xf]
  %v239 = vld [vmem:[%s7 + $0xc] sm:$0xf]
  %v240 = vld [vmem:[%s7 + $0x10] sm:$0xf]
  %v241 = vld [vmem:[%s7 + $0x14] sm:$0xf]
  %v242 = vld [vmem:[%s7 + $0x18] sm:$0xf]
  %v243 = vld [vmem:[%s7 + $0x1c] sm:$0xf]
  %v244 = vld [vmem:[%s8] sm:$0x1]
  %v246 = vperm.slane %v244, 0
  %v256 = vunpack.c.l.b16 %v236
  %v257 = vunpack.c.l.b16 %v237
  %v258 = vunpack.c.l.b16 %v238
  %v259 = vunpack.c.l.b16 %v239
  %v260 = vunpack.c.l.b16 %v240
  %v261 = vunpack.c.l.b16 %v241
  %v262 = vunpack.c.l.b16 %v242
  %v263 = vunpack.c.l.b16 %v243
  %v264 = vpack.c.b16 %v257, %v256
  %v265 = vpack.c.b16 %v259, %v258
  %v266 = vpack.c.b16 %v261, %v260
  %v267 = vpack.c.b16 %v263, %v262
  %vm272 = vcmask 523264
  %v274 = vsel %vm272, %v235, 0
  %276 = vmatpush.bf16.msra.mxu0 0
  %277 = vmatpush.bf16.msra.mxu0 0
  %278 = vmatpush.bf16.msra.mxu0 0
  %279 = vmatpush.bf16.msra.mxu0 0
  %280 = vmatpush.bf16.msra.mxu0 %v267
  %281 = vmatpush.bf16.msra.mxu0 %v266
  %282 = vmatpush.bf16.msra.mxu0 %v265
  %283 = vmatpush.bf16.msra.mxu0 %v264
  %284 = vmatmul.bf16.gmra.mxu0 %v274
  %v285 = vpop.f32.mrf.mxu0
  %v286 = vadd.f32 %v246, %v285
  %v287 = vpop.f32.mrf.mxu0
  %288 = vdwg.mxu0
  %vm289 = vcmask 15360
  %290 = vst.msk [vmem:[%s9] sm:$0xff] %vm289, %v286
  // Predicated region
  $region38: #{tpu_custom_call.1} parent=0 // pred_check
    _
  $region39: #{tpu_custom_call.1} parent=0 // pred_check_branch
    %292 = sbr.rel (0) target = $region41
  $region40: #{tpu_custom_call.1} parent=0 // pred_region
    _
  $region41: #{tpu_custom_call.1} parent=0 // pred_fallthru
    _
  // Predicated region
  $region42: #{tpu_custom_call.1} parent=0 // pred_check
    _
  $region43: #{tpu_custom_call.1} parent=0 // pred_check_branch
    %294 = sbr.rel (0) target = $region45
  $region44: #{tpu_custom_call.1} parent=0 // pred_region
    _
  $region45: #{tpu_custom_call.1} parent=0 // pred_fallthru
    _

</llo_original>
